<compile_context>
chip_gen: v7x
topology: tpu7x:2x2x1
jax: 0.10.0
libtpu: 0.0.40
codegen_flags: <defaults>
</compile_context>

<pallas_src>
import functools
import math

import jax
import jax.numpy as jnp
from jax.experimental import pallas as pl
from jax.experimental.pallas import tpu as pltpu


def _round_up(x, m):
    return ((x + m - 1) // m) * m


def _cdiv(a, b):
    return (a + b - 1) // b


# --------------------------------------------------------------------------------------
# Kernels
# --------------------------------------------------------------------------------------

def _embed_kernel_lanedense(xt_ref, w_ref, b_ref, o_ref):
    """out = xt.T @ w + b  (the sqrt(d_model) scale is pre-folded into w and b).

    xt_ref: (k_pad, tm)     lane-dense row tile of x (streamed, double-buffered)
    w_ref : (k_pad, d_model) VMEM-resident weight
    b_ref : (1, d_model)     VMEM-resident bias
    o_ref : (tm, d_model)    unpadded, lane-dense output tile
    """
    xt = xt_ref[...]
    w = w_ref[...]
    b = b_ref[...].astype(jnp.float32)
    # MXU matmul contracting dim 0 of both operands (lhs-transposed); leaves VPU/XLU slack,
    # DMA is the only binding resource for this kernel.
    acc = jax.lax.dot_general(
        xt, w,
        dimension_numbers=(((0,), (0,)), ((), ())),
        preferred_element_type=jnp.float32)
    o_ref[...] = (acc + b).astype(o_ref.dtype)


def _embed_kernel_rowmajor(x_ref, w_ref, b_ref, o_ref, *, k):
    """Single-block kernel for small m; x kept in its original (m, k) layout."""
    x = x_ref[...]
    w = w_ref[...]
    b = b_ref[...].astype(jnp.float32)
    if k > 16:
        acc = jnp.dot(x, w[:k, :], preferred_element_type=jnp.float32)
    else:
        # Tiny K in the overhead-dominated regime: short unrolled VPU FMA chain.
        acc = jnp.zeros((x.shape[0], w.shape[1]), dtype=jnp.float32)
        for kk in range(k):
            acc = acc + (x[:, kk:kk + 1].astype(jnp.float32)
                         * w[kk:kk + 1, :].astype(jnp.float32))
    o_ref[...] = (acc + b).astype(o_ref.dtype)


# --------------------------------------------------------------------------------------
# Parameter prep + wrapper
# --------------------------------------------------------------------------------------

def prepare_linear_embedding_params(weight, bias, d_model):
    """One-time parameter prep (NOT per call).

    Folds the sqrt(d_model) scale into weight/bias and pads the contraction dim (inp_size)
    up to a multiple of 8 with zero rows (free in HBM: a (inp_size, m) layout pads the
    sublane dim to 8 anyway).  d_model is NOT padded.

    weight: (inp_size, d_model)  (transposed vs PyTorch's (d_model, inp_size))
    bias:   (d_model,)
    Returns weight_p (k_pad, d_model), bias_p (1, d_model) with k_pad = round_up(inp_size, 8).
    """
    inp_size, dm = weight.shape
    assert dm == d_model
    scale = math.sqrt(d_model)
    k_pad = _round_up(inp_size, 8)
    w = weight * scale
    if k_pad != inp_size:
        w = jnp.pad(w, ((0, k_pad - inp_size), (0, 0)))
    b = (bias * scale).reshape(1, d_model)
    return w, b


def _choose_tm(m, k_pad, d_model, dtype_bytes,
               vmem_budget=32 * 1024 * 1024, tm_cap=4096):
    """Row tile for the lane-dense streaming path.

    tm is a multiple of 128 (lane dim of the x block), which also satisfies every dtype's
    sublane multiple (8/16/32) for the (tm, d_model) output block.  Prefers an even
    grid-step count >= 2 so both v7x TensorCores get work under dimension_semantics=parallel.
    """
    per_row = 2 * (k_pad + d_model) * dtype_bytes             # double-buffered x + out tiles
    resident = 2 * (k_pad * d_model + d_model) * dtype_bytes  # weight + bias
    tm = tm_cap
    while tm > 128 and per_row * tm + resident > vmem_budget:
        tm //= 2
    steps = _cdiv(m, tm)
    if steps < 2:
        tm = max(128, _round_up(_cdiv(m, 2), 128))
        steps = _cdiv(m, tm)
    if steps > 1 and steps % 2 == 1:
        alt = _round_up(_cdiv(m, steps + 1), 128)
        if alt >= 128 and _cdiv(m, alt) % 2 == 0:
            tm = alt
    return tm


def linear_embedding(x, weight_p, bias_p, d_model, *, min_rows_for_pallas=512):
    """y = LinearEmbedding(x) = (x @ W + b) * sqrt(d_model); scale baked into weight_p/bias_p.

    x:        (..., inp_size)
    weight_p: (k_pad, d_model)  k_pad = round_up(inp_size, 8), zero rows beyond inp_size
    bias_p:   (1, d_model)
    """
    k_pad, dm = weight_p.shape
    assert dm == d_model
    inp_size = x.shape[-1]
    assert inp_size <= k_pad
    lead_shape = x.shape[:-1]
    m = math.prod(lead_shape)
    x2 = x.reshape(m, inp_size)
    dtype_bytes = jnp.dtype(x.dtype).itemsize

    if m < min_rows_for_pallas:
        # Tiny row counts: a standalone pallas_call is pure launch/step overhead plus an extra
        # HBM round-trip; let XLA fuse the matmul with its neighbours instead.
        out = x2 @ weight_p[:inp_size, :] + bias_p
        return out.reshape(*lead_shape, d_model)

    if m < 256:
        # Single-block kernel: full-array blocks (exempt from the (8,128) divisibility rule),
        # x in its original layout, no padding, no post-call slicing.
        kernel = functools.partial(_embed_kernel_rowmajor, k=inp_size)
        out = pl.pallas_call(
            kernel,
            out_shape=jax.ShapeDtypeStruct((m, d_model), x.dtype),
            grid_spec=pltpu.PrefetchScalarGridSpec(
                num_scalar_prefetch=0,
                grid=(1,),
                in_specs=[
                    pl.BlockSpec((m, inp_size), lambda i: (0, 0)),
                    pl.BlockSpec((k_pad, d_model), lambda i: (0, 0)),
                    pl.BlockSpec((1, d_model), lambda i: (0, 0)),
                ],
                out_specs=pl.BlockSpec((m, d_model), lambda i: (0, 0)),
            ),
            compiler_params=pltpu.CompilerParams(
                dimension_semantics=("arbitrary",)),
        )(x2, weight_p, bias_p)
        return out.reshape(*lead_shape, d_model)

    # ---------------- Lane-dense streaming path ----------------
    # Repack x so the row dim maps to lanes: (m, inp_size) -> (k_pad, m).  This makes the
    # kernel's x-side DMA ~16-32x smaller than streaming (tm, inp_size) blocks of the
    # 128-lane-padded original layout.
    # TODO(synk): in the full model, have the producer of `src` emit this (inp_size, m) layout
    # (or fuse src_embed into the first encoder-layer kernel) so this transpose is not a
    # separate XLA copy over HBM.
    xt = jnp.transpose(x2)
    if k_pad != inp_size:
        xt = jnp.pad(xt, ((0, k_pad - inp_size), (0, 0)))  # free: sublane dim pads to 8 anyway

    tm = _choose_tm(m, k_pad, d_model, dtype_bytes)
    grid = (_cdiv(m, tm),)  # ragged last block clipped by Pallas; rows are independent, so
                            # garbage in the OOB lanes of the last x block only produces
                            # output rows that the masked writeback discards.

    vmem_need = (2 * tm * (k_pad + d_model) + 2 * (k_pad * d_model + d_model)) * dtype_bytes
    vmem_limit = int(min(max(2 * vmem_need, 16 * 1024 * 1024), 48 * 1024 * 1024))

    cost = pl.CostEstimate(
        flops=2 * m * inp_size * d_model,
        transcendentals=0,
        bytes_accessed=(k_pad * m + k_pad * d_model + d_model + m * d_model) * dtype_bytes,
    )

    out = pl.pallas_call(
        _embed_kernel_lanedense,
        out_shape=jax.ShapeDtypeStruct((m, d_model), x.dtype),
        grid_spec=pltpu.PrefetchScalarGridSpec(
            num_scalar_prefetch=0,
            grid=grid,
            in_specs=[
                pl.BlockSpec((k_pad, tm), lambda i: (0, i)),        # streamed, lane-dense x
                pl.BlockSpec((k_pad, d_model), lambda i: (0, 0)),   # VMEM-resident weight
                pl.BlockSpec((1, d_model), lambda i: (0, 0)),       # VMEM-resident bias
            ],
            out_specs=pl.BlockSpec((tm, d_model), lambda i: (i, 0)),  # unpadded output, no slice
        ),
        compiler_params=pltpu.CompilerParams(
            dimension_semantics=("parallel",),   # independent row blocks -> megacore on v7x
            vmem_limit_bytes=vmem_limit,
        ),
        cost_estimate=cost,
    )(xt, weight_p, bias_p)

    return out.reshape(*lead_shape, d_model)


def encoder_decoder_forward(src, tgt, src_mask, tgt_mask, *,
                            src_embed, encoder, decoder, query_pos=None):
    """Mirrors EncoderDecoder.forward: decode(encode(src_embed(src), src_mask), ...)."""
    # TODO(synk): the encoder/decoder stacks are injected nn.Modules in the PyTorch spec with no
    # concrete definition here; they are composed as plain callables and only src_embed
    # (LinearEmbedding) is implemented as a Pallas kernel.
    memory = encoder(src_embed(src), src_mask)
    return decoder(tgt, memory, src_mask, tgt_mask, query_pos)


if __name__ == "__main__":
    # Small shapes consistent with the module: (batch, seq, inp_size) -> (batch, seq, d_model)
    batch, seq, inp_size, d_model = 2, 8, 4, 32

    key = jax.random.PRNGKey(0)
    kx, kw, kb, kt, kx2 = jax.random.split(key, 5)

    src = jax.random.normal(kx, (batch, seq, inp_size), dtype=jnp.float32)
    tgt = jax.random.normal(kt, (batch, seq, d_model), dtype=jnp.float32)
    src_mask = jnp.ones((batch, 1, seq), dtype=jnp.float32)
    tgt_mask = jnp.ones((batch, seq, seq), dtype=jnp.float32)

    # nn.Linear-style init (uniform(-1/sqrt(in), 1/sqrt(in)))
    bound = 1.0 / math.sqrt(inp_size)
    weight = jax.random.uniform(
        kw, (inp_size, d_model), minval=-bound, maxval=bound, dtype=jnp.float32)
    bias = jax.random.uniform(
        kb, (d_model,), minval=-bound, maxval=bound, dtype=jnp.float32)

    # One-time param prep: fold sqrt(d_model), pad inp_size -> multiple of 8 (zero rows).
    w_p, b_p = prepare_linear_embedding_params(weight, bias, d_model)

    # min_rows_for_pallas=0 forces the Pallas path for the tiny demo shapes.
    src_embed_fn = lambda s: linear_embedding(s, w_p, b_p, d_model, min_rows_for_pallas=0)
    # Injected encoder/decoder placeholders (identity pass-throughs for the demo wiring).
    encoder_fn = lambda e, mask: e
    decoder_fn = lambda t, memory, smask, tmask, qpos: memory

    out = encoder_decoder_forward(
        src, tgt, src_mask, tgt_mask,
        src_embed=src_embed_fn, encoder=encoder_fn, decoder=decoder_fn)
    out = jax.block_until_ready(out)

    # Reference: plain JAX, original (unscaled, unpadded) params.
    ref = (src @ weight + bias) * math.sqrt(d_model)
    assert out.shape == (batch, seq, d_model)
    assert jnp.allclose(out, ref, atol=1e-4, rtol=1e-4)

    # Second check: exercise the lane-dense streaming path (multi-step grid, even step count,
    # ragged edge block) at a larger-but-still-small row count.
    m_big = 2000
    x_big = jax.random.normal(kx2, (m_big, inp_size), dtype=jnp.float32)
    out_big = jax.block_until_ready(linear_embedding(x_big, w_p, b_p, d_model))
    ref_big = (x_big @ weight + bias) * math.sqrt(d_model)
    assert out_big.shape == (m_big, d_model)
    assert jnp.allclose(out_big, ref_big, atol=1e-3, rtol=1e-3)

    print("KERNEL_OK")
</pallas_src>

<mosaic_0001>
module attributes {stable_mosaic.version = 11 : i64} {
  func.func @_embed_kernel_rowmajor(%arg0: i32, %arg1: memref<16x4xf32, #tpu.memory_space<vmem>>, %arg2: memref<8x32xf32, #tpu.memory_space<vmem>>, %arg3: memref<1x32xf32, #tpu.memory_space<vmem>>, %arg4: memref<16x32xf32, #tpu.memory_space<vmem>>) attributes {dimension_semantics = [#tpu.dimension_semantics<arbitrary>], iteration_bounds = array<i64: 1>, scalar_prefetch = 0 : i64, scratch_operands = 0 : i64, tpu.core_type = #tpu.core_type<tc>, window_params = [{pipeline_mode = #tpu.pipeline_mode<synchronous>, transform_indices = @transform_0, window_bounds = array<i64: 16, 4>}, {pipeline_mode = #tpu.pipeline_mode<synchronous>, transform_indices = @transform_1, window_bounds = array<i64: 8, 32>}, {pipeline_mode = #tpu.pipeline_mode<synchronous>, transform_indices = @transform_2, window_bounds = array<i64: 1, 32>}, {pipeline_mode = #tpu.pipeline_mode<synchronous>, transform_indices = @transform_3, window_bounds = array<i64: 16, 32>}]} {
    %c0 = arith.constant 0 : index
    %c0_0 = arith.constant 0 : index
    %0 = vector.load %arg1[%c0, %c0_0] : memref<16x4xf32, #tpu.memory_space<vmem>>, vector<16x4xf32>
    %c0_1 = arith.constant 0 : index
    %c0_2 = arith.constant 0 : index
    %1 = vector.load %arg2[%c0_1, %c0_2] : memref<8x32xf32, #tpu.memory_space<vmem>>, vector<8x32xf32>
    %c0_3 = arith.constant 0 : index
    %c0_4 = arith.constant 0 : index
    %2 = vector.load %arg3[%c0_3, %c0_4] : memref<1x32xf32, #tpu.memory_space<vmem>>, vector<1x32xf32>
    %cst = arith.constant 0.000000e+00 : f32
    %3 = vector.broadcast %cst : f32 to vector<16x32xf32>
    %4 = vector.extract_strided_slice %0 {offsets = [0, 0], sizes = [16, 1], strides = [1, 1]} : vector<16x4xf32> to vector<16x1xf32>
    %5 = vector.extract_strided_slice %1 {offsets = [0, 0], sizes = [1, 32], strides = [1, 1]} : vector<8x32xf32> to vector<1x32xf32>
    %6 = vector.broadcast %4 : vector<16x1xf32> to vector<16x32xf32>
    %7 = vector.broadcast %5 : vector<1x32xf32> to vector<16x32xf32>
    %8 = arith.mulf %6, %7 : vector<16x32xf32>
    %9 = arith.addf %3, %8 : vector<16x32xf32>
    %10 = vector.extract_strided_slice %0 {offsets = [0, 1], sizes = [16, 1], strides = [1, 1]} : vector<16x4xf32> to vector<16x1xf32>
    %11 = vector.extract_strided_slice %1 {offsets = [1, 0], sizes = [1, 32], strides = [1, 1]} : vector<8x32xf32> to vector<1x32xf32>
    %12 = vector.broadcast %10 : vector<16x1xf32> to vector<16x32xf32>
    %13 = vector.broadcast %11 : vector<1x32xf32> to vector<16x32xf32>
    %14 = arith.mulf %12, %13 : vector<16x32xf32>
    %15 = arith.addf %9, %14 : vector<16x32xf32>
    %16 = vector.extract_strided_slice %0 {offsets = [0, 2], sizes = [16, 1], strides = [1, 1]} : vector<16x4xf32> to vector<16x1xf32>
    %17 = vector.extract_strided_slice %1 {offsets = [2, 0], sizes = [1, 32], strides = [1, 1]} : vector<8x32xf32> to vector<1x32xf32>
    %18 = vector.broadcast %16 : vector<16x1xf32> to vector<16x32xf32>
    %19 = vector.broadcast %17 : vector<1x32xf32> to vector<16x32xf32>
    %20 = arith.mulf %18, %19 : vector<16x32xf32>
    %21 = arith.addf %15, %20 : vector<16x32xf32>
    %22 = vector.extract_strided_slice %0 {offsets = [0, 3], sizes = [16, 1], strides = [1, 1]} : vector<16x4xf32> to vector<16x1xf32>
    %23 = vector.extract_strided_slice %1 {offsets = [3, 0], sizes = [1, 32], strides = [1, 1]} : vector<8x32xf32> to vector<1x32xf32>
    %24 = vector.broadcast %22 : vector<16x1xf32> to vector<16x32xf32>
    %25 = vector.broadcast %23 : vector<1x32xf32> to vector<16x32xf32>
    %26 = arith.mulf %24, %25 : vector<16x32xf32>
    %27 = arith.addf %21, %26 : vector<16x32xf32>
    %28 = vector.broadcast %2 : vector<1x32xf32> to vector<16x32xf32>
    %29 = arith.addf %27, %28 : vector<16x32xf32>
    %c0_5 = arith.constant 0 : index
    %c0_6 = arith.constant 0 : index
    %30 = vector.load %arg4[%c0_5, %c0_6] : memref<16x32xf32, #tpu.memory_space<vmem>>, vector<16x32xf32>
    tpu.vector_store %arg4[%c0_5, %c0_6], %29 {strides = array<i32>} : memref<16x32xf32, #tpu.memory_space<vmem>>, vector<16x32xf32>,
    return
  }
  func.func @transform_0(%arg0: i32) -> (i32, i32) {
    %c0_i32 = arith.constant 0 : i32
    %c0_i32_0 = arith.constant 0 : i32
    %c0_i32_1 = arith.constant 0 : i32
    return %c0_i32, %c0_i32_0 : i32, i32
  }
  func.func @transform_1(%arg0: i32) -> (i32, i32) {
    %c0_i32 = arith.constant 0 : i32
    %c0_i32_0 = arith.constant 0 : i32
    %c0_i32_1 = arith.constant 0 : i32
    return %c0_i32, %c0_i32_0 : i32, i32
  }
  func.func @transform_2(%arg0: i32) -> (i32, i32) {
    %c0_i32 = arith.constant 0 : i32
    %c0_i32_0 = arith.constant 0 : i32
    %c0_i32_1 = arith.constant 0 : i32
    return %c0_i32, %c0_i32_0 : i32, i32
  }
  func.func @transform_3(%arg0: i32) -> (i32, i32) {
    %c0_i32 = arith.constant 0 : i32
    %c0_i32_0 = arith.constant 0 : i32
    %c0_i32_1 = arith.constant 0 : i32
    return %c0_i32, %c0_i32_0 : i32, i32
  }
}

</mosaic_0001>

<llo_original>
// kernel: tpu_custom_call.1
$region0: #{tpu_custom_call.1}
  #allocation0 [shape = 'u32[]', space=smem, size = 0x4, offset = 0x4, fixed_abs, tag = 'smem constant byte address 0x4 - core index']
  #allocation1 [shape = 'u32[144,128]{1,0:T(1,128)}', space=vmem, size = 0x12000, scoped, tag = 'internal scratch']
  %s0 = inlined_call_operand.vmem [shape: f32[16,4], index: 0, kind: input, shape index: {}]
  %s1 = inlined_call_operand.vmem [shape: f32[8,32], index: 1, kind: input, shape index: {}]
  %s2 = inlined_call_operand.vmem [shape: f32[1,32], index: 2, kind: input, shape index: {}]
  %s3 = inlined_call_operand.hbm [shape: f32[16,32], index: 3, kind: output, shape index: {}]
  %s4 = sld [smem:[#allocation0]]
  $region22: #{tpu_custom_call.1} parent=0
    _
  %s6 = ssub.s32 1, %s4
  %s7 = scalar_select 0, %s6, %s4
  $region1: #{tpu_custom_call.1} parent=0
    #allocation2 [shape = 'u8[8192]{0}', space=vmem, size = 0x2000, scoped, tag = 'output window, operand 0, single buffered']
    #allocation3 [shape = 's32[1]{0}', space=sflag, size = 0x4, scoped, tag = 'scoped memory for tpu_custom_call.1']
    %8 = vsyncpa [#allocation3], 0
    // Predicated region
    $region2: #{tpu_custom_call.1} parent=1 // pred_check
      _
    $region3: #{tpu_custom_call.1} parent=1 // pred_check_branch
      %10 = sbr.rel (0) target = $region5
    $region4: #{tpu_custom_call.1} parent=1 // pred_region
      _
    $region5: #{tpu_custom_call.1} parent=1 // pred_fallthru
      _
    // Predicated region
    $region6: #{tpu_custom_call.1} parent=1 // pred_check
      _
    $region7: #{tpu_custom_call.1} parent=1 // pred_check_branch
      %12 = sbr.rel (0) target = $region9
    $region8: #{tpu_custom_call.1} parent=1 // pred_region
      _
    $region9: #{tpu_custom_call.1} parent=1 // pred_fallthru
      _
    // Predicated region
    $region10: #{tpu_custom_call.1} parent=1 // pred_check
      _
    $region11: #{tpu_custom_call.1} parent=1 // pred_check_branch
      %14 = sbr.rel (0) target = $region13
    $region12: #{tpu_custom_call.1} parent=1 // pred_region
      _
    $region13: #{tpu_custom_call.1} parent=1 // pred_fallthru
      _
    %v15 = vld [vmem:[%s0] sm:$0xff]
    %v16 = vld [vmem:[%s0 + $0x8] sm:$0xff]
    %v17 = vld [vmem:[%s1] sm:$0xff]
    %v18 = vld [vmem:[%s2] sm:$0x1]
    %20 = vset.pattern.permute.xlu0 0
    %21 = vperm.xlu0 %20, %v15
    %v22 = vpop.permute.xlu0 %21
    %25 = vset.pattern.permute.xlu0 0
    %26 = vperm.xlu0 %25, %v16
    %v27 = vpop.permute.xlu0 %26
    %v29 = vlaneseq
    %v30 = vshrl.u32 %v29, 7
    %v31 = vsub.s32 0, %v30
    %v32 = vrot.slane %v17, %v31
    %v33 = vmul.f32 %v22, %v32
    %v34 = vmul.f32 %v27, %v32
    %v35 = vadd.f32 %v33, 0.0
    %v36 = vadd.f32 %v34, 0.0
    %37 = vset.pattern.permute.xlu0 1
    %38 = vperm.xlu0 %37, %v15
    %v39 = vpop.permute.xlu0 %38
    %41 = vset.pattern.permute.xlu0 1
    %42 = vperm.xlu0 %41, %v16
    %v43 = vpop.permute.xlu0 %42
    %v45 = vlaneseq
    %v46 = vshrl.u32 %v45, 7
    %v47 = vsub.s32 1, %v46
    %v48 = vrot.slane %v17, %v47
    %v49 = vmul.f32 %v39, %v48
    %v50 = vmul.f32 %v43, %v48
    %v51 = vadd.f32 %v35, %v49
    %v52 = vadd.f32 %v36, %v50
    %53 = vset.pattern.permute.xlu0 2
    %54 = vperm.xlu0 %53, %v15
    %v55 = vpop.permute.xlu0 %54
    %57 = vset.pattern.permute.xlu0 2
    %58 = vperm.xlu0 %57, %v16
    %v59 = vpop.permute.xlu0 %58
    %v61 = vlaneseq
    %v62 = vshrl.u32 %v61, 7
    %v63 = vsub.s32 2, %v62
    %v64 = vrot.slane %v17, %v63
    %v65 = vmul.f32 %v55, %v64
    %v66 = vmul.f32 %v59, %v64
    %v67 = vadd.f32 %v51, %v65
    %v68 = vadd.f32 %v52, %v66
    %69 = vset.pattern.permute.xlu0 3
    %70 = vperm.xlu0 %69, %v15
    %v71 = vpop.permute.xlu0 %70
    %73 = vset.pattern.permute.xlu0 3
    %74 = vperm.xlu0 %73, %v16
    %v75 = vpop.permute.xlu0 %74
    %v77 = vlaneseq
    %v78 = vshrl.u32 %v77, 7
    %v79 = vsub.s32 3, %v78
    %v80 = vrot.slane %v17, %v79
    %v81 = vmul.f32 %v71, %v80
    %v82 = vmul.f32 %v75, %v80
    %v83 = vadd.f32 %v67, %v81
    %v84 = vadd.f32 %v68, %v82
    %v86 = vlaneseq
    %v87 = vshrl.u32 %v86, 7
    %v88 = vsub.s32 0, %v87
    %v89 = vrot.slane %v18, %v88
    %v91 = vadd.f32 %v83, %v89
    %v92 = vadd.f32 %v84, %v89
    %vm93 = vcmask 261120
    %94 = vst.msk [vmem:[#allocation2] sm:$0xff] %vm93, %v91
    %95 = vst.msk [vmem:[#allocation2 + $0x8] sm:$0xff] %vm93, %v92
    // Predicated region
    $region14: #{tpu_custom_call.1} parent=1 // pred_check
      _
    $region15: #{tpu_custom_call.1} parent=1 // pred_check_branch
      %97 = sbr.rel (0) target = $region17
    $region16: #{tpu_custom_call.1} parent=1 // pred_region
      %s99 = ssub.s32 256, 256
      %100 = vsyncadd [#allocation3], %s99
      %s101 = sshll.u32 [#allocation2], 4
      %s102 = int_to_ptr.vmem [resolvable:$true] %s101
      %107 = dma.vmem_to_hbm [thread:$0]  %s102, 256, %s3, [#allocation3], 128, 128, 8
    $region17: #{tpu_custom_call.1} parent=1 // pred_fallthru
      _
    // Predicated region
    $region18: #{tpu_custom_call.1} parent=1 // pred_check
      _
    $region19: #{tpu_custom_call.1} parent=1 // pred_check_branch
      %109 = sbr.rel (0) target = $region21
    $region20: #{tpu_custom_call.1} parent=1 // pred_region
      %110 = dma.done [#allocation3], 256
    $region21: #{tpu_custom_call.1} parent=1 // pred_fallthru
      _
    %111 = vsyncpa [#allocation3], 1

</llo_original>
